<compile_context>
chip_gen: v7x
topology: tpu7x:2x2x1
jax: 0.10.0
libtpu: 0.0.40
codegen_flags: <defaults>
</compile_context>

<pallas_src>
import jax
import jax.numpy as jnp
from jax.experimental import pallas as pl
from jax.experimental.pallas import tpu as pltpu


def rnn_kernel(x_ref, pk_ref, whh_ref, out_ref):
    # x_ref : (T, B)  time-major, I=1 squeezed
    # pk_ref: (4, H)  rows = [W_ih^T (I==1), b_ih + b_hh, W_fc row, b_fc bcast]
    # whh_ref: (H, H) = W_hh^T
    # out_ref: (B, 1)
    T, B = x_ref.shape
    H = whh_ref.shape[0]

    wih = pk_ref[0:1, :]     # (1, H)
    bias = pk_ref[1:2, :]    # (1, H)
    wfc = pk_ref[2:3, :]     # (1, H)
    bfc = pk_ref[3:4, 0:1]   # (1, 1)

    # ---- Input projection for ALL timesteps, hoisted out of the recurrence ----
    # x_proj[t, b, :] = x[t, b] * W_ih^T + (b_ih + b_hh); pure VPU, no MXU.
    # T is the leading (non-vreg) axis, so x_proj[t] below is a free tile pick.
    x = x_ref[...]                                         # (T, B)
    x_proj = x[:, :, None] * wih[None, :, :] + bias[None, :, :]   # (T, B, H)

    whh = whh_ref[...]                                     # (H, H), loaded once

    # ---- Recurrence: only h @ W_hh^T + tanh on the serial path ----
    # t = 0: h_{-1} == 0 -> the h @ W_hh term vanishes, skip that matmul.
    h = jnp.tanh(x_proj[0])                                # (B, H)
    for t in range(1, T):  # T static & tiny -> fully unrolled, h stays in vregs
        h = jnp.tanh(x_proj[t]
                     + jnp.dot(h, whh, preferred_element_type=jnp.float32))

    # ---- fc on last hidden state: out = h @ W_fc^T + b_fc ----
    # (B, H) * (1, H) -> lane reduce -> (B, 1); avoids an N=1 MXU matmul.
    out_ref[...] = jnp.sum(h * wfc, axis=-1, keepdims=True) + bfc


def rnn_model_forward(x_btI, params):
    """x_btI: (B, T, I) batch-first, like the PyTorch module. Returns (B, 1)."""
    B, T, I = x_btI.shape
    H = params["w_hh"].shape[0]
    assert I == 1, "kernel specialised to the module default input_size=1"

    # Layout plumbing only (no extra compute in the kernel's serial section):
    x_tb = jnp.transpose(x_btI.astype(jnp.float32)[:, :, 0], (1, 0))       # (T, B)
    whh_t = params["w_hh"].T.astype(jnp.float32)                           # (H, H)

    wih_row = params["w_ih"].reshape(1, H).astype(jnp.float32)             # W_ih^T, I==1
    bias_row = (params["b_ih"] + params["b_hh"]).reshape(1, H).astype(jnp.float32)
    wfc_row = params["w_fc"].reshape(1, H).astype(jnp.float32)
    bfc_row = jnp.broadcast_to(params["b_fc"].reshape(1, 1).astype(jnp.float32), (1, H))
    packed = jnp.concatenate([wih_row, bias_row, wfc_row, bfc_row], axis=0)  # (4, H)

    vmem = pl.BlockSpec(memory_space=pltpu.MemorySpace.VMEM)  # whole-array, resident
    out = pl.pallas_call(
        rnn_kernel,
        out_shape=jax.ShapeDtypeStruct((B, 1), jnp.float32),
        in_specs=[vmem, vmem, vmem],
        out_specs=vmem,
    )(x_tb, packed, whh_t)
    return out


def init_params(key, input_size=1, hidden_size=32):
    # PyTorch nn.RNN / nn.Linear default init: U(-1/sqrt(fan), 1/sqrt(fan))
    k_rnn = 1.0 / jnp.sqrt(hidden_size)
    k_fc = 1.0 / jnp.sqrt(hidden_size)
    keys = jax.random.split(key, 6)
    return {
        "w_ih": jax.random.uniform(keys[0], (hidden_size, input_size),
                                   minval=-k_rnn, maxval=k_rnn, dtype=jnp.float32),
        "w_hh": jax.random.uniform(keys[1], (hidden_size, hidden_size),
                                   minval=-k_rnn, maxval=k_rnn, dtype=jnp.float32),
        "b_ih": jax.random.uniform(keys[2], (hidden_size,),
                                   minval=-k_rnn, maxval=k_rnn, dtype=jnp.float32),
        "b_hh": jax.random.uniform(keys[3], (hidden_size,),
                                   minval=-k_rnn, maxval=k_rnn, dtype=jnp.float32),
        "w_fc": jax.random.uniform(keys[4], (1, hidden_size),
                                   minval=-k_fc, maxval=k_fc, dtype=jnp.float32),
        "b_fc": jax.random.uniform(keys[5], (1,),
                                   minval=-k_fc, maxval=k_fc, dtype=jnp.float32),
    }


def reference_forward(x_btI, params):
    """Pure-JAX reference matching PyTorch RNN semantics."""
    B, T, I = x_btI.shape
    H = params["w_hh"].shape[0]
    h = jnp.zeros((B, H), dtype=jnp.float32)
    for t in range(T):
        h = jnp.tanh(x_btI[:, t, :] @ params["w_ih"].T + params["b_ih"]
                     + h @ params["w_hh"].T + params["b_hh"])
    return h @ params["w_fc"].T + params["b_fc"]


if __name__ == "__main__":
    key = jax.random.PRNGKey(0)
    k_x, k_p = jax.random.split(key)

    B, T, I, H = 8, 8, 1, 32
    x = jax.random.normal(k_x, (B, T, I), dtype=jnp.float32)
    params = init_params(k_p, input_size=I, hidden_size=H)

    out = rnn_model_forward(x, params)
    out = jax.block_until_ready(out)

    ref = reference_forward(x, params)
    assert out.shape == (B, 1)
    assert jnp.allclose(out, ref, atol=1e-5, rtol=1e-5), (out, ref)

    print("KERNEL_OK")
</pallas_src>

<mosaic_0001>
module attributes {stable_mosaic.version = 11 : i64} {
  func.func @rnn_kernel(%arg0: memref<8x8xf32, #tpu.memory_space<vmem>>, %arg1: memref<4x32xf32, #tpu.memory_space<vmem>>, %arg2: memref<32x32xf32, #tpu.memory_space<vmem>>, %arg3: memref<8x1xf32, #tpu.memory_space<vmem>>) attributes {dimension_semantics = [], scalar_prefetch = 0 : i64, scratch_operands = 0 : i64, tpu.core_type = #tpu.core_type<tc>} {
    %c0 = arith.constant 0 : index
    %c0_0 = arith.constant 0 : index
    %0 = vector.load %arg1[%c0, %c0_0] : memref<4x32xf32, #tpu.memory_space<vmem>>, vector<1x32xf32>
    %c1 = arith.constant 1 : index
    %c0_1 = arith.constant 0 : index
    %1 = vector.load %arg1[%c1, %c0_1] : memref<4x32xf32, #tpu.memory_space<vmem>>, vector<1x32xf32>
    %c2 = arith.constant 2 : index
    %c0_2 = arith.constant 0 : index
    %2 = vector.load %arg1[%c2, %c0_2] : memref<4x32xf32, #tpu.memory_space<vmem>>, vector<1x32xf32>
    %c3 = arith.constant 3 : index
    %c0_3 = arith.constant 0 : index
    %3 = vector.load %arg1[%c3, %c0_3] : memref<4x32xf32, #tpu.memory_space<vmem>>, vector<1x1xf32>
    %c0_4 = arith.constant 0 : index
    %c0_5 = arith.constant 0 : index
    %4 = vector.load %arg0[%c0_4, %c0_5] : memref<8x8xf32, #tpu.memory_space<vmem>>, vector<8x8xf32>
    %5 = vector.shape_cast %4 : vector<8x8xf32> to vector<8x8x1xf32>
    %6 = vector.shape_cast %0 : vector<1x32xf32> to vector<1x1x32xf32>
    %7 = vector.broadcast %5 : vector<8x8x1xf32> to vector<8x8x32xf32>
    %8 = vector.broadcast %6 : vector<1x1x32xf32> to vector<8x8x32xf32>
    %9 = arith.mulf %7, %8 : vector<8x8x32xf32>
    %10 = vector.shape_cast %1 : vector<1x32xf32> to vector<1x1x32xf32>
    %11 = vector.broadcast %10 : vector<1x1x32xf32> to vector<8x8x32xf32>
    %12 = arith.addf %9, %11 : vector<8x8x32xf32>
    %c0_6 = arith.constant 0 : index
    %c0_7 = arith.constant 0 : index
    %13 = vector.load %arg2[%c0_6, %c0_7] : memref<32x32xf32, #tpu.memory_space<vmem>>, vector<32x32xf32>
    %14 = vector.extract_strided_slice %12 {offsets = [0, 0, 0], sizes = [1, 8, 32], strides = [1, 1, 1]} : vector<8x8x32xf32> to vector<1x8x32xf32>
    %15 = vector.shape_cast %14 : vector<1x8x32xf32> to vector<8x32xf32>
    %16 = math.tanh %15 : vector<8x32xf32>
    %17 = vector.extract_strided_slice %12 {offsets = [1, 0, 0], sizes = [1, 8, 32], strides = [1, 1, 1]} : vector<8x8x32xf32> to vector<1x8x32xf32>
    %18 = vector.shape_cast %17 : vector<1x8x32xf32> to vector<8x32xf32>
    %cst = arith.constant dense<0.000000e+00> : vector<8x32xf32>
    %19 = tpu.matmul %16, %13, %cst {dimension_numbers = #tpu.dot_dimension_numbers<[1], [0], [0], [1], [0, 0, 1, 1], [], []>} : vector<8x32xf32>, vector<32x32xf32>, vector<8x32xf32> -> vector<8x32xf32>
    %20 = arith.addf %18, %19 : vector<8x32xf32>
    %21 = math.tanh %20 : vector<8x32xf32>
    %22 = vector.extract_strided_slice %12 {offsets = [2, 0, 0], sizes = [1, 8, 32], strides = [1, 1, 1]} : vector<8x8x32xf32> to vector<1x8x32xf32>
    %23 = vector.shape_cast %22 : vector<1x8x32xf32> to vector<8x32xf32>
    %cst_8 = arith.constant dense<0.000000e+00> : vector<8x32xf32>
    %24 = tpu.matmul %21, %13, %cst_8 {dimension_numbers = #tpu.dot_dimension_numbers<[1], [0], [0], [1], [0, 0, 1, 1], [], []>} : vector<8x32xf32>, vector<32x32xf32>, vector<8x32xf32> -> vector<8x32xf32>
    %25 = arith.addf %23, %24 : vector<8x32xf32>
    %26 = math.tanh %25 : vector<8x32xf32>
    %27 = vector.extract_strided_slice %12 {offsets = [3, 0, 0], sizes = [1, 8, 32], strides = [1, 1, 1]} : vector<8x8x32xf32> to vector<1x8x32xf32>
    %28 = vector.shape_cast %27 : vector<1x8x32xf32> to vector<8x32xf32>
    %cst_9 = arith.constant dense<0.000000e+00> : vector<8x32xf32>
    %29 = tpu.matmul %26, %13, %cst_9 {dimension_numbers = #tpu.dot_dimension_numbers<[1], [0], [0], [1], [0, 0, 1, 1], [], []>} : vector<8x32xf32>, vector<32x32xf32>, vector<8x32xf32> -> vector<8x32xf32>
    %30 = arith.addf %28, %29 : vector<8x32xf32>
    %31 = math.tanh %30 : vector<8x32xf32>
    %32 = vector.extract_strided_slice %12 {offsets = [4, 0, 0], sizes = [1, 8, 32], strides = [1, 1, 1]} : vector<8x8x32xf32> to vector<1x8x32xf32>
    %33 = vector.shape_cast %32 : vector<1x8x32xf32> to vector<8x32xf32>
    %cst_10 = arith.constant dense<0.000000e+00> : vector<8x32xf32>
    %34 = tpu.matmul %31, %13, %cst_10 {dimension_numbers = #tpu.dot_dimension_numbers<[1], [0], [0], [1], [0, 0, 1, 1], [], []>} : vector<8x32xf32>, vector<32x32xf32>, vector<8x32xf32> -> vector<8x32xf32>
    %35 = arith.addf %33, %34 : vector<8x32xf32>
    %36 = math.tanh %35 : vector<8x32xf32>
    %37 = vector.extract_strided_slice %12 {offsets = [5, 0, 0], sizes = [1, 8, 32], strides = [1, 1, 1]} : vector<8x8x32xf32> to vector<1x8x32xf32>
    %38 = vector.shape_cast %37 : vector<1x8x32xf32> to vector<8x32xf32>
    %cst_11 = arith.constant dense<0.000000e+00> : vector<8x32xf32>
    %39 = tpu.matmul %36, %13, %cst_11 {dimension_numbers = #tpu.dot_dimension_numbers<[1], [0], [0], [1], [0, 0, 1, 1], [], []>} : vector<8x32xf32>, vector<32x32xf32>, vector<8x32xf32> -> vector<8x32xf32>
    %40 = arith.addf %38, %39 : vector<8x32xf32>
    %41 = math.tanh %40 : vector<8x32xf32>
    %42 = vector.extract_strided_slice %12 {offsets = [6, 0, 0], sizes = [1, 8, 32], strides = [1, 1, 1]} : vector<8x8x32xf32> to vector<1x8x32xf32>
    %43 = vector.shape_cast %42 : vector<1x8x32xf32> to vector<8x32xf32>
    %cst_12 = arith.constant dense<0.000000e+00> : vector<8x32xf32>
    %44 = tpu.matmul %41, %13, %cst_12 {dimension_numbers = #tpu.dot_dimension_numbers<[1], [0], [0], [1], [0, 0, 1, 1], [], []>} : vector<8x32xf32>, vector<32x32xf32>, vector<8x32xf32> -> vector<8x32xf32>
    %45 = arith.addf %43, %44 : vector<8x32xf32>
    %46 = math.tanh %45 : vector<8x32xf32>
    %47 = vector.extract_strided_slice %12 {offsets = [7, 0, 0], sizes = [1, 8, 32], strides = [1, 1, 1]} : vector<8x8x32xf32> to vector<1x8x32xf32>
    %48 = vector.shape_cast %47 : vector<1x8x32xf32> to vector<8x32xf32>
    %cst_13 = arith.constant dense<0.000000e+00> : vector<8x32xf32>
    %49 = tpu.matmul %46, %13, %cst_13 {dimension_numbers = #tpu.dot_dimension_numbers<[1], [0], [0], [1], [0, 0, 1, 1], [], []>} : vector<8x32xf32>, vector<32x32xf32>, vector<8x32xf32> -> vector<8x32xf32>
    %50 = arith.addf %48, %49 : vector<8x32xf32>
    %51 = math.tanh %50 : vector<8x32xf32>
    %52 = vector.broadcast %2 : vector<1x32xf32> to vector<8x32xf32>
    %53 = arith.mulf %51, %52 : vector<8x32xf32>
    %cst_14 = arith.constant dense<0.000000e+00> : vector<8xf32>
    %54 = vector.multi_reduction <add>, %53, %cst_14 [1] : vector<8x32xf32> to vector<8xf32>
    %55 = vector.shape_cast %54 : vector<8xf32> to vector<8x1xf32>
    %56 = vector.broadcast %3 : vector<1x1xf32> to vector<8x1xf32>
    %57 = arith.addf %55, %56 : vector<8x1xf32>
    %c0_15 = arith.constant 0 : index
    %c0_16 = arith.constant 0 : index
    %58 = vector.load %arg3[%c0_15, %c0_16] : memref<8x1xf32, #tpu.memory_space<vmem>>, vector<8x1xf32>
    tpu.vector_store %arg3[%c0_15, %c0_16], %57 {strides = array<i32>} : memref<8x1xf32, #tpu.memory_space<vmem>>, vector<8x1xf32>,
    return
  }
}

</mosaic_0001>

<llo_original>
// kernel: tpu_custom_call.1
$region0: #{tpu_custom_call.1}
  #allocation0 [shape = 'u32[]', space=smem, size = 0x4, offset = 0x4, fixed_abs, tag = 'smem constant byte address 0x4 - core index']
  #allocation1 [shape = 'u32[144,128]{1,0:T(1,128)}', space=vmem, size = 0x12000, scoped, tag = 'internal scratch']
  %s0 = inlined_call_operand.hbm [shape: f32[8,8], index: 0, kind: input, shape index: {}]
  %s1 = inlined_call_operand.hbm [shape: f32[4,32], index: 1, kind: input, shape index: {}]
  %s2 = inlined_call_operand.hbm [shape: f32[32,32], index: 2, kind: input, shape index: {}]
  %s3 = inlined_call_operand.vmem [shape: f32[8,1], index: 3, kind: output, shape index: {}]
  %s4 = sld [smem:[#allocation0]]
  $region34: #{tpu_custom_call.1} parent=0
    _
  %s6 = ssub.s32 1, %s4
  %s7 = scalar_select 0, %s6, %s4
  $region1: #{tpu_custom_call.1} parent=0
    #allocation2 [shape = 'u8[4096]{0}', space=vmem, size = 0x1000, scoped, tag = 'input window, operand 0, single buffered']
    #allocation3 [shape = 's32[1]{0}', space=sflag, size = 0x4, scoped, tag = 'scoped memory for tpu_custom_call.1']
    #allocation4 [shape = 'u8[2048]{0}', space=vmem, size = 0x800, scoped, tag = 'input window, operand 1, single buffered']
    #allocation5 [shape = 's32[1]{0}', space=sflag, size = 0x4, scoped, tag = 'scoped memory for tpu_custom_call.1']
    #allocation6 [shape = 'u8[16384]{0}', space=vmem, size = 0x4000, scoped, tag = 'input window, operand 2, single buffered']
    %8 = vsyncpa [#allocation3], 0
    %9 = vsyncpa [#allocation5], 0
    // Predicated region
    $region2: #{tpu_custom_call.1} parent=1 // pred_check
      _
    $region3: #{tpu_custom_call.1} parent=1 // pred_check_branch
      %11 = sbr.rel (0) target = $region5
    $region4: #{tpu_custom_call.1} parent=1 // pred_region
      %s13 = ssub.s32 128, 128
      %14 = vsyncadd [#allocation3], %s13
      %s16 = sshll.u32 [#allocation2], 4
      %s17 = int_to_ptr.vmem [resolvable:$true] %s16
      %19 = dma.hbm_to_vmem [thread:$0]  %s0, 128, %s17, [#allocation3]
    $region5: #{tpu_custom_call.1} parent=1 // pred_fallthru
      _
    // Predicated region
    $region6: #{tpu_custom_call.1} parent=1 // pred_check
      _
    $region7: #{tpu_custom_call.1} parent=1 // pred_check_branch
      %21 = sbr.rel (0) target = $region9
    $region8: #{tpu_custom_call.1} parent=1 // pred_region
      %s23 = ssub.s32 64, 64
      %24 = vsyncadd [#allocation5], %s23
      %s26 = sshll.u32 [#allocation4], 4
      %s27 = int_to_ptr.vmem [resolvable:$true] %s26
      %29 = dma.hbm_to_vmem [thread:$0]  %s1, 64, %s27, [#allocation5]
    $region9: #{tpu_custom_call.1} parent=1 // pred_fallthru
      _
    // Predicated region
    $region10: #{tpu_custom_call.1} parent=1 // pred_check
      _
    $region11: #{tpu_custom_call.1} parent=1 // pred_check_branch
      %31 = sbr.rel (0) target = $region13
    $region12: #{tpu_custom_call.1} parent=1 // pred_region
      %s33 = ssub.s32 512, 512
      %34 = vsyncadd [#allocation5], %s33
      %s35 = sshll.u32 [#allocation6], 4
      %s36 = int_to_ptr.vmem [resolvable:$true] %s35
      %41 = dma.hbm_to_vmem [thread:$0]  %s2, 512, %s36, [#allocation5], 128, 128, 8
    $region13: #{tpu_custom_call.1} parent=1 // pred_fallthru
      _
    // Predicated region
    $region14: #{tpu_custom_call.1} parent=1 // pred_check
      _
    $region15: #{tpu_custom_call.1} parent=1 // pred_check_branch
      %43 = sbr.rel (0) target = $region17
    $region16: #{tpu_custom_call.1} parent=1 // pred_region
      %44 = dma.done [#allocation3], 128
    $region17: #{tpu_custom_call.1} parent=1 // pred_fallthru
      _
    // Predicated region
    $region18: #{tpu_custom_call.1} parent=1 // pred_check
      _
    $region19: #{tpu_custom_call.1} parent=1 // pred_check_branch
      %46 = sbr.rel (0) target = $region21
    $region20: #{tpu_custom_call.1} parent=1 // pred_region
      %47 = dma.done [#allocation5], 64
    $region21: #{tpu_custom_call.1} parent=1 // pred_fallthru
      _
    // Predicated region
    $region22: #{tpu_custom_call.1} parent=1 // pred_check
      _
    $region23: #{tpu_custom_call.1} parent=1 // pred_check_branch
      %49 = sbr.rel (0) target = $region25
    $region24: #{tpu_custom_call.1} parent=1 // pred_region
      %50 = dma.done [#allocation5], 512
    $region25: #{tpu_custom_call.1} parent=1 // pred_fallthru
      _
    %v51 = vld [vmem:[#allocation4] sm:$0x1]
    %v52 = vld [vmem:[#allocation4 + $0x1] sm:$0x1]
    %v53 = vld [vmem:[#allocation4 + $0x2] sm:$0x1]
    %v54 = vld [vmem:[#allocation4 + $0x3] sm:$0x1]
    %v55 = vld [vmem:[#allocation2] sm:$0xff]
    %v56 = vlaneseq
    %v57 = vshrl.u32 %v56, 7
    %v58 = vsub.s32 0, %v57
    %v59 = vrot.slane %v55, %v58
    %61 = vbcast.lane.b32.xlu0 %v59, 256
    %v62 = vpop.permute.xlu0 %61
    %v63 = vlaneseq
    %v64 = vshrl.u32 %v63, 7
    %v65 = vsub.s32 1, %v64
    %v66 = vrot.slane %v55, %v65
    %68 = vbcast.lane.b32.xlu0 %v66, 256
    %v69 = vpop.permute.xlu0 %68
    %v70 = vlaneseq
    %v71 = vshrl.u32 %v70, 7
    %v72 = vsub.s32 2, %v71
    %v73 = vrot.slane %v55, %v72
    %75 = vbcast.lane.b32.xlu0 %v73, 256
    %v76 = vpop.permute.xlu0 %75
    %v77 = vlaneseq
    %v78 = vshrl.u32 %v77, 7
    %v79 = vsub.s32 3, %v78
    %v80 = vrot.slane %v55, %v79
    %82 = vbcast.lane.b32.xlu0 %v80, 256
    %v83 = vpop.permute.xlu0 %82
    %v84 = vlaneseq
    %v85 = vshrl.u32 %v84, 7
    %v86 = vsub.s32 4, %v85
    %v87 = vrot.slane %v55, %v86
    %89 = vbcast.lane.b32.xlu0 %v87, 256
    %v90 = vpop.permute.xlu0 %89
    %v91 = vlaneseq
    %v92 = vshrl.u32 %v91, 7
    %v93 = vsub.s32 5, %v92
    %v94 = vrot.slane %v55, %v93
    %96 = vbcast.lane.b32.xlu0 %v94, 256
    %v97 = vpop.permute.xlu0 %96
    %v98 = vlaneseq
    %v99 = vshrl.u32 %v98, 7
    %v100 = vsub.s32 6, %v99
    %v101 = vrot.slane %v55, %v100
    %103 = vbcast.lane.b32.xlu0 %v101, 256
    %v104 = vpop.permute.xlu0 %103
    %v105 = vlaneseq
    %v106 = vshrl.u32 %v105, 7
    %v107 = vsub.s32 7, %v106
    %v108 = vrot.slane %v55, %v107
    %110 = vbcast.lane.b32.xlu0 %v108, 256
    %v111 = vpop.permute.xlu0 %110
    %v112 = vlaneseq
    %v113 = vshrl.u32 %v112, 7
    %v114 = vsub.s32 0, %v113
    %v115 = vrot.slane %v51, %v114
    %v116 = vmul.f32 %v62, %v115
    %v117 = vmul.f32 %v69, %v115
    %v118 = vmul.f32 %v76, %v115
    %v119 = vmul.f32 %v83, %v115
    %v120 = vmul.f32 %v90, %v115
    %v121 = vmul.f32 %v97, %v115
    %v122 = vmul.f32 %v104, %v115
    %v123 = vmul.f32 %v111, %v115
    %v124 = vlaneseq
    %v125 = vshrl.u32 %v124, 7
    %v126 = vsub.s32 0, %v125
    %v127 = vrot.slane %v52, %v126
    %v128 = vadd.f32 %v116, %v127
    %v129 = vadd.f32 %v117, %v127
    %v130 = vadd.f32 %v118, %v127
    %v131 = vadd.f32 %v119, %v127
    %v132 = vadd.f32 %v120, %v127
    %v133 = vadd.f32 %v121, %v127
    %v134 = vadd.f32 %v122, %v127
    %v135 = vadd.f32 %v123, %v127
    %v136 = vld [vmem:[#allocation6] sm:$0xff]
    %v137 = vld [vmem:[#allocation6 + $0x8] sm:$0xff]
    %v138 = vld [vmem:[#allocation6 + $0x10] sm:$0xff]
    %v139 = vld [vmem:[#allocation6 + $0x18] sm:$0xff]
    %v140 = vtanh.pop %v128
    %vm141 = vcmask 261120
    %v143 = vsel %vm141, %v140, 0
    %145 = vmatprep.subr.mxu0 0.0
    %146 = vmatpush1.msra.mxu0 %v136
    %147 = vmatprep.subr.mxu0 0.0
    %148 = vmatpush1.msra.mxu0 %v137
    %149 = vmatprep.subr.mxu0 0.0
    %150 = vmatpush1.msra.mxu0 %v138
    %151 = vmatprep.subr.mxu0 0.0
    %152 = vmatpush1.msra.mxu0 %v139
    %153 = vmatprep.subr.mxu0 0.0
    %154 = vmatpush1.msra.mxu0 0.0
    %155 = vmatprep.subr.mxu0 0.0
    %156 = vmatpush1.msra.mxu0 0.0
    %157 = vmatprep.subr.mxu0 0.0
    %158 = vmatpush1.msra.mxu0 0.0
    %159 = vmatprep.subr.mxu0 0.0
    %160 = vmatpush1.msra.mxu0 0.0
    %161 = vmatprep.subr.mxu0 0.0
    %162 = vmatpush1.msra.mxu0 0.0
    %163 = vmatprep.subr.mxu0 0.0
    %164 = vmatpush1.msra.mxu0 0.0
    %165 = vmatprep.subr.mxu0 0.0
    %166 = vmatpush1.msra.mxu0 0.0
    %167 = vmatprep.subr.mxu0 0.0
    %168 = vmatpush1.msra.mxu0 0.0
    %169 = vmatprep.subr.mxu0 0.0
    %170 = vmatpush1.msra.mxu0 0.0
    %171 = vmatprep.subr.mxu0 0.0
    %172 = vmatpush1.msra.mxu0 0.0
    %173 = vmatprep.subr.mxu0 0.0
    %174 = vmatpush1.msra.mxu0 0.0
    %175 = vmatprep.subr.mxu0 0.0
    %176 = vmatpush1.msra.mxu0 0.0
    %177 = vmatprep.subr.mxu0 0.0
    %178 = vmatpush1.msra.mxu0 0.0
    %179 = vmatprep.subr.mxu0 0.0
    %180 = vmatpush1.msra.mxu0 0.0
    %181 = vmatprep.subr.mxu0 0.0
    %182 = vmatpush1.msra.mxu0 0.0
    %183 = vmatprep.subr.mxu0 0.0
    %184 = vmatpush1.msra.mxu0 0.0
    %185 = vmatprep.subr.mxu0 0.0
    %186 = vmatpush1.msra.mxu0 0.0
    %187 = vmatprep.subr.mxu0 0.0
    %188 = vmatpush1.msra.mxu0 0.0
    %189 = vmatprep.subr.mxu0 0.0
    %190 = vmatpush1.msra.mxu0 0.0
    %191 = vmatprep.subr.mxu0 0.0
    %192 = vmatpush1.msra.mxu0 0.0
    %193 = vmatprep.subr.mxu0 0.0
    %194 = vmatpush1.msra.mxu0 0.0
    %195 = vmatprep.subr.mxu0 0.0
    %196 = vmatpush1.msra.mxu0 0.0
    %197 = vmatprep.subr.mxu0 0.0
    %198 = vmatpush1.msra.mxu0 0.0
    %199 = vmatprep.subr.mxu0 0.0
    %200 = vmatpush1.msra.mxu0 0.0
    %201 = vmatprep.subr.mxu0 0.0
    %202 = vmatpush1.msra.mxu0 0.0
    %203 = vmatprep.subr.mxu0 0.0
    %204 = vmatpush1.msra.mxu0 0.0
    %205 = vmatprep.subr.mxu0 0.0
    %206 = vmatpush1.msra.mxu0 0.0
    %207 = vmatprep.subr.mxu0 0.0
    %208 = vmatpush1.msra.mxu0 0.0
    %209 = vmatprep.mubr.f32.mxu0 0.0
    %210 = vmatmul.mubr.f32.gmra.mrb[0].mxu0 %v143
    %v211 = vpop.f32.mrb[0].mxu0
    %v212 = vadd.f32 0.0, %v211
    %v213 = vpop.f32.mrb[0].mxu0
    %214 = vdwg.mxu0
    %v215 = vadd.f32 %v129, %v212
    %v216 = vtanh.pop %v215
    %v218 = vsel %vm141, %v216, 0
    %220 = vmatprep.subr.mxu0 0.0
    %221 = vmatpush1.msra.mxu0 %v136
    %222 = vmatprep.subr.mxu0 0.0
    %223 = vmatpush1.msra.mxu0 %v137
    %224 = vmatprep.subr.mxu0 0.0
    %225 = vmatpush1.msra.mxu0 %v138
    %226 = vmatprep.subr.mxu0 0.0
    %227 = vmatpush1.msra.mxu0 %v139
    %228 = vmatprep.subr.mxu0 0.0
    %229 = vmatpush1.msra.mxu0 0.0
    %230 = vmatprep.subr.mxu0 0.0
    %231 = vmatpush1.msra.mxu0 0.0
    %232 = vmatprep.subr.mxu0 0.0
    %233 = vmatpush1.msra.mxu0 0.0
    %234 = vmatprep.subr.mxu0 0.0
    %235 = vmatpush1.msra.mxu0 0.0
    %236 = vmatprep.subr.mxu0 0.0
    %237 = vmatpush1.msra.mxu0 0.0
    %238 = vmatprep.subr.mxu0 0.0
    %239 = vmatpush1.msra.mxu0 0.0
    %240 = vmatprep.subr.mxu0 0.0
    %241 = vmatpush1.msra.mxu0 0.0
    %242 = vmatprep.subr.mxu0 0.0
    %243 = vmatpush1.msra.mxu0 0.0
    %244 = vmatprep.subr.mxu0 0.0
    %245 = vmatpush1.msra.mxu0 0.0
    %246 = vmatprep.subr.mxu0 0.0
    %247 = vmatpush1.msra.mxu0 0.0
    %248 = vmatprep.subr.mxu0 0.0
    %249 = vmatpush1.msra.mxu0 0.0
    %250 = vmatprep.subr.mxu0 0.0
    %251 = vmatpush1.msra.mxu0 0.0
    %252 = vmatprep.subr.mxu0 0.0
    %253 = vmatpush1.msra.mxu0 0.0
    %254 = vmatprep.subr.mxu0 0.0
    %255 = vmatpush1.msra.mxu0 0.0
    %256 = vmatprep.subr.mxu0 0.0
    %257 = vmatpush1.msra.mxu0 0.0
    %258 = vmatprep.subr.mxu0 0.0
    %259 = vmatpush1.msra.mxu0 0.0
    %260 = vmatprep.subr.mxu0 0.0
    %261 = vmatpush1.msra.mxu0 0.0
    %262 = vmatprep.subr.mxu0 0.0
    %263 = vmatpush1.msra.mxu0 0.0
    %264 = vmatprep.subr.mxu0 0.0
    %265 = vmatpush1.msra.mxu0 0.0
    %266 = vmatprep.subr.mxu0 0.0
    %267 = vmatpush1.msra.mxu0 0.0
    %268 = vmatprep.subr.mxu0 0.0
    %269 = vmatpush1.msra.mxu0 0.0
    %270 = vmatprep.subr.mxu0 0.0
    %271 = vmatpush1.msra.mxu0 0.0
    %272 = vmatprep.subr.mxu0 0.0
    %273 = vmatpush1.msra.mxu0 0.0
    %274 = vmatprep.subr.mxu0 0.0
    %275 = vmatpush1.msra.mxu0 0.0
    %276 = vmatprep.subr.mxu0 0.0
    %277 = vmatpush1.msra.mxu0 0.0
    %278 = vmatprep.subr.mxu0 0.0
    %279 = vmatpush1.msra.mxu0 0.0
    %280 = vmatprep.subr.mxu0 0.0
    %281 = vmatpush1.msra.mxu0 0.0
    %282 = vmatprep.subr.mxu0 0.0
    %283 = vmatpush1.msra.mxu0 0.0
    %284 = vmatprep.mubr.f32.mxu0 0.0
    %285 = vmatmul.mubr.f32.gmra.mrb[0].mxu0 %v218
    %v286 = vpop.f32.mrb[0].mxu0
    %v287 = vadd.f32 0.0, %v286
    %v288 = vpop.f32.mrb[0].mxu0
    %289 = vdwg.mxu0
    %v290 = vadd.f32 %v130, %v287
    %v291 = vtanh.pop %v290
    %v293 = vsel %vm141, %v291, 0
    %295 = vmatprep.subr.mxu0 0.0
    %296 = vmatpush1.msra.mxu0 %v136
    %297 = vmatprep.subr.mxu0 0.0
    %298 = vmatpush1.msra.mxu0 %v137
    %299 = vmatprep.subr.mxu0 0.0
    %300 = vmatpush1.msra.mxu0 %v138
    %301 = vmatprep.subr.mxu0 0.0
    %302 = vmatpush1.msra.mxu0 %v139
    %303 = vmatprep.subr.mxu0 0.0
    %304 = vmatpush1.msra.mxu0 0.0
    %305 = vmatprep.subr.mxu0 0.0
    %306 = vmatpush1.msra.mxu0 0.0
    %307 = vmatprep.subr.mxu0 0.0
    %308 = vmatpush1.msra.mxu0 0.0
    %309 = vmatprep.subr.mxu0 0.0
    %310 = vmatpush1.msra.mxu0 0.0
    %311 = vmatprep.subr.mxu0 0.0
    %312 = vmatpush1.msra.mxu0 0.0
    %313 = vmatprep.subr.mxu0 0.0
    %314 = vmatpush1.msra.mxu0 0.0
    %315 = vmatprep.subr.mxu0 0.0
    %316 = vmatpush1.msra.mxu0 0.0
    %317 = vmatprep.subr.mxu0 0.0
    %318 = vmatpush1.msra.mxu0 0.0
    %319 = vmatprep.subr.mxu0 0.0
    %320 = vmatpush1.msra.mxu0 0.0
    %321 = vmatprep.subr.mxu0 0.0
    %322 = vmatpush1.msra.mxu0 0.0
    %323 = vmatprep.subr.mxu0 0.0
    %324 = vmatpush1.msra.mxu0 0.0
    %325 = vmatprep.subr.mxu0 0.0
    %326 = vmatpush1.msra.mxu0 0.0
    %327 = vmatprep.subr.mxu0 0.0
    %328 = vmatpush1.msra.mxu0 0.0
    %329 = vmatprep.subr.mxu0 0.0
    %330 = vmatpush1.msra.mxu0 0.0
    %331 = vmatprep.subr.mxu0 0.0
    %332 = vmatpush1.msra.mxu0 0.0
    %333 = vmatprep.subr.mxu0 0.0
    %334 = vmatpush1.msra.mxu0 0.0
    %335 = vmatprep.subr.mxu0 0.0
    %336 = vmatpush1.msra.mxu0 0.0
    %337 = vmatprep.subr.mxu0 0.0
    %338 = vmatpush1.msra.mxu0 0.0
    %339 = vmatprep.subr.mxu0 0.0
    %340 = vmatpush1.msra.mxu0 0.0
    %341 = vmatprep.subr.mxu0 0.0
    %342 = vmatpush1.msra.mxu0 0.0
    %343 = vmatprep.subr.mxu0 0.0
    %344 = vmatpush1.msra.mxu0 0.0
    %345 = vmatprep.subr.mxu0 0.0
    %346 = vmatpush1.msra.mxu0 0.0
    %347 = vmatprep.subr.mxu0 0.0
    %348 = vmatpush1.msra.mxu0 0.0
    %349 = vmatprep.subr.mxu0 0.0
    %350 = vmatpush1.msra.mxu0 0.0
    %351 = vmatprep.subr.mxu0 0.0
    %352 = vmatpush1.msra.mxu0 0.0
    %353 = vmatprep.subr.mxu0 0.0
    %354 = vmatpush1.msra.mxu0 0.0
    %355 = vmatprep.subr.mxu0 0.0
    %356 = vmatpush1.msra.mxu0 0.0
    %357 = vmatprep.subr.mxu0 0.0
    %358 = vmatpush1.msra.mxu0 0.0
    %359 = vmatprep.mubr.f32.mxu0 0.0
    %360 = vmatmul.mubr.f32.gmra.mrb[0].mxu0 %v293
    %v361 = vpop.f32.mrb[0].mxu0
    %v362 = vadd.f32 0.0, %v361
    %v363 = vpop.f32.mrb[0].mxu0
    %364 = vdwg.mxu0
    %v365 = vadd.f32 %v131, %v362
    %v366 = vtanh.pop %v365
    %v368 = vsel %vm141, %v366, 0
    %370 = vmatprep.subr.mxu0 0.0
    %371 = vmatpush1.msra.mxu0 %v136
    %372 = vmatprep.subr.mxu0 0.0
    %373 = vmatpush1.msra.mxu0 %v137
    %374 = vmatprep.subr.mxu0 0.0
    %375 = vmatpush1.msra.mxu0 %v138
    %376 = vmatprep.subr.mxu0 0.0
    %377 = vmatpush1.msra.mxu0 %v139
    %378 = vmatprep.subr.mxu0 0.0
    %379 = vmatpush1.msra.mxu0 0.0
    %380 = vmatprep.subr.mxu0 0.0
    %381 = vmatpush1.msra.mxu0 0.0
    %382 = vmatprep.subr.mxu0 0.0
    %383 = vmatpush1.msra.mxu0 0.0
    %384 = vmatprep.subr.mxu0 0.0
    %385 = vmatpush1.msra.mxu0 0.0
    %386 = vmatprep.subr.mxu0 0.0
    %387 = vmatpush1.msra.mxu0 0.0
    %388 = vmatprep.subr.mxu0 0.0
    %389 = vmatpush1.msra.mxu0 0.0
    %390 = vmatprep.subr.mxu0 0.0
    %391 = vmatpush1.msra.mxu0 0.0
    %392 = vmatprep.subr.mxu0 0.0
    %393 = vmatpush1.msra.mxu0 0.0
    %394 = vmatprep.subr.mxu0 0.0
    %395 = vmatpush1.msra.mxu0 0.0
    %396 = vmatprep.subr.mxu0 0.0
    %397 = vmatpush1.msra.mxu0 0.0
    %398 = vmatprep.subr.mxu0 0.0
    %399 = vmatpush1.msra.mxu0 0.0
    %400 = vmatprep.subr.mxu0 0.0
    %401 = vmatpush1.msra.mxu0 0.0
    %402 = vmatprep.subr.mxu0 0.0
    %403 = vmatpush1.msra.mxu0 0.0
    %404 = vmatprep.subr.mxu0 0.0
    %405 = vmatpush1.msra.mxu0 0.0
    %406 = vmatprep.subr.mxu0 0.0
    %407 = vmatpush1.msra.mxu0 0.0
    %408 = vmatprep.subr.mxu0 0.0
    %409 = vmatpush1.msra.mxu0 0.0
    %410 = vmatprep.subr.mxu0 0.0
    %411 = vmatpush1.msra.mxu0 0.0
    %412 = vmatprep.subr.mxu0 0.0
    %413 = vmatpush1.msra.mxu0 0.0
    %414 = vmatprep.subr.mxu0 0.0
    %415 = vmatpush1.msra.mxu0 0.0
    %416 = vmatprep.subr.mxu0 0.0
    %417 = vmatpush1.msra.mxu0 0.0
    %418 = vmatprep.subr.mxu0 0.0
    %419 = vmatpush1.msra.mxu0 0.0
    %420 = vmatprep.subr.mxu0 0.0
    %421 = vmatpush1.msra.mxu0 0.0
    %422 = vmatprep.subr.mxu0 0.0
    %423 = vmatpush1.msra.mxu0 0.0
    %424 = vmatprep.subr.mxu0 0.0
    %425 = vmatpush1.msra.mxu0 0.0
    %426 = vmatprep.subr.mxu0 0.0
    %427 = vmatpush1.msra.mxu0 0.0
    %428 = vmatprep.subr.mxu0 0.0
    %429 = vmatpush1.msra.mxu0 0.0
    %430 = vmatprep.subr.mxu0 0.0
    %431 = vmatpush1.msra.mxu0 0.0
    %432 = vmatprep.subr.mxu0 0.0
    %433 = vmatpush1.msra.mxu0 0.0
    %434 = vmatprep.mubr.f32.mxu0 0.0
    %435 = vmatmul.mubr.f32.gmra.mrb[0].mxu0 %v368
    %v436 = vpop.f32.mrb[0].mxu0
    %v437 = vadd.f32 0.0, %v436
    %v438 = vpop.f32.mrb[0].mxu0
    %439 = vdwg.mxu0
    %v440 = vadd.f32 %v132, %v437
    %v441 = vtanh.pop %v440
    %v443 = vsel %vm141, %v441, 0
    %445 = vmatprep.subr.mxu0 0.0
    %446 = vmatpush1.msra.mxu0 %v136
    %447 = vmatprep.subr.mxu0 0.0
    %448 = vmatpush1.msra.mxu0 %v137
    %449 = vmatprep.subr.mxu0 0.0
    %450 = vmatpush1.msra.mxu0 %v138
    %451 = vmatprep.subr.mxu0 0.0
    %452 = vmatpush1.msra.mxu0 %v139
    %453 = vmatprep.subr.mxu0 0.0
    %454 = vmatpush1.msra.mxu0 0.0
    %455 = vmatprep.subr.mxu0 0.0
    %456 = vmatpush1.msra.mxu0 0.0
    %457 = vmatprep.subr.mxu0 0.0
    %458 = vmatpush1.msra.mxu0 0.0
    %459 = vmatprep.subr.mxu0 0.0
    %460 = vmatpush1.msra.mxu0 0.0
    %461 = vmatprep.subr.mxu0 0.0
    %462 = vmatpush1.msra.mxu0 0.0
    %463 = vmatprep.subr.mxu0 0.0
    %464 = vmatpush1.msra.mxu0 0.0
    %465 = vmatprep.subr.mxu0 0.0
    %466 = vmatpush1.msra.mxu0 0.0
    %467 = vmatprep.subr.mxu0 0.0
    %468 = vmatpush1.msra.mxu0 0.0
    %469 = vmatprep.subr.mxu0 0.0
    %470 = vmatpush1.msra.mxu0 0.0
    %471 = vmatprep.subr.mxu0 0.0
    %472 = vmatpush1.msra.mxu0 0.0
    %473 = vmatprep.subr.mxu0 0.0
    %474 = vmatpush1.msra.mxu0 0.0
    %475 = vmatprep.subr.mxu0 0.0
    %476 = vmatpush1.msra.mxu0 0.0
    %477 = vmatprep.subr.mxu0 0.0
    %478 = vmatpush1.msra.mxu0 0.0
    %479 = vmatprep.subr.mxu0 0.0
    %480 = vmatpush1.msra.mxu0 0.0
    %481 = vmatprep.subr.mxu0 0.0
    %482 = vmatpush1.msra.mxu0 0.0
    %483 = vmatprep.subr.mxu0 0.0
    %484 = vmatpush1.msra.mxu0 0.0
    %485 = vmatprep.subr.mxu0 0.0
    %486 = vmatpush1.msra.mxu0 0.0
    %487 = vmatprep.subr.mxu0 0.0
    %488 = vmatpush1.msra.mxu0 0.0
    %489 = vmatprep.subr.mxu0 0.0
    %490 = vmatpush1.msra.mxu0 0.0
    %491 = vmatprep.subr.mxu0 0.0
    %492 = vmatpush1.msra.mxu0 0.0
    %493 = vmatprep.subr.mxu0 0.0
    %494 = vmatpush1.msra.mxu0 0.0
    %495 = vmatprep.subr.mxu0 0.0
    %496 = vmatpush1.msra.mxu0 0.0
    %497 = vmatprep.subr.mxu0 0.0
    %498 = vmatpush1.msra.mxu0 0.0
    %499 = vmatprep.subr.mxu0 0.0
    %500 = vmatpush1.msra.mxu0 0.0
    %501 = vmatprep.subr.mxu0 0.0
    %502 = vmatpush1.msra.mxu0 0.0
    %503 = vmatprep.subr.mxu0 0.0
    %504 = vmatpush1.msra.mxu0 0.0
    %505 = vmatprep.subr.mxu0 0.0
    %506 = vmatpush1.msra.mxu0 0.0
    %507 = vmatprep.subr.mxu0 0.0
    %508 = vmatpush1.msra.mxu0 0.0
    %509 = vmatprep.mubr.f32.mxu0 0.0
    %510 = vmatmul.mubr.f32.gmra.mrb[0].mxu0 %v443
    %v511 = vpop.f32.mrb[0].mxu0
    %v512 = vadd.f32 0.0, %v511
    %v513 = vpop.f32.mrb[0].mxu0
    %514 = vdwg.mxu0
    %v515 = vadd.f32 %v133, %v512
    %v516 = vtanh.pop %v515
    %v518 = vsel %vm141, %v516, 0
    %520 = vmatprep.subr.mxu0 0.0
    %521 = vmatpush1.msra.mxu0 %v136
    %522 = vmatprep.subr.mxu0 0.0
    %523 = vmatpush1.msra.mxu0 %v137
    %524 = vmatprep.subr.mxu0 0.0
    %525 = vmatpush1.msra.mxu0 %v138
    %526 = vmatprep.subr.mxu0 0.0
    %527 = vmatpush1.msra.mxu0 %v139
    %528 = vmatprep.subr.mxu0 0.0
    %529 = vmatpush1.msra.mxu0 0.0
    %530 = vmatprep.subr.mxu0 0.0
    %531 = vmatpush1.msra.mxu0 0.0
    %532 = vmatprep.subr.mxu0 0.0
    %533 = vmatpush1.msra.mxu0 0.0
    %534 = vmatprep.subr.mxu0 0.0
    %535 = vmatpush1.msra.mxu0 0.0
    %536 = vmatprep.subr.mxu0 0.0
    %537 = vmatpush1.msra.mxu0 0.0
    %538 = vmatprep.subr.mxu0 0.0
    %539 = vmatpush1.msra.mxu0 0.0
    %540 = vmatprep.subr.mxu0 0.0
    %541 = vmatpush1.msra.mxu0 0.0
    %542 = vmatprep.subr.mxu0 0.0
    %543 = vmatpush1.msra.mxu0 0.0
    %544 = vmatprep.subr.mxu0 0.0
    %545 = vmatpush1.msra.mxu0 0.0
    %546 = vmatprep.subr.mxu0 0.0
    %547 = vmatpush1.msra.mxu0 0.0
    %548 = vmatprep.subr.mxu0 0.0
    %549 = vmatpush1.msra.mxu0 0.0
    %550 = vmatprep.subr.mxu0 0.0
    %551 = vmatpush1.msra.mxu0 0.0
    %552 = vmatprep.subr.mxu0 0.0
    %553 = vmatpush1.msra.mxu0 0.0
    %554 = vmatprep.subr.mxu0 0.0
    %555 = vmatpush1.msra.mxu0 0.0
    %556 = vmatprep.subr.mxu0 0.0
    %557 = vmatpush1.msra.mxu0 0.0
    %558 = vmatprep.subr.mxu0 0.0
    %559 = vmatpush1.msra.mxu0 0.0
    %560 = vmatprep.subr.mxu0 0.0
    %561 = vmatpush1.msra.mxu0 0.0
    %562 = vmatprep.subr.mxu0 0.0
    %563 = vmatpush1.msra.mxu0 0.0
    %564 = vmatprep.subr.mxu0 0.0
    %565 = vmatpush1.msra.mxu0 0.0
    %566 = vmatprep.subr.mxu0 0.0
    %567 = vmatpush1.msra.mxu0 0.0
    %568 = vmatprep.subr.mxu0 0.0
    %569 = vmatpush1.msra.mxu0 0.0
    %570 = vmatprep.subr.mxu0 0.0
    %571 = vmatpush1.msra.mxu0 0.0
    %572 = vmatprep.subr.mxu0 0.0
    %573 = vmatpush1.msra.mxu0 0.0
    %574 = vmatprep.subr.mxu0 0.0
    %575 = vmatpush1.msra.mxu0 0.0
    %576 = vmatprep.subr.mxu0 0.0
    %577 = vmatpush1.msra.mxu0 0.0
    %578 = vmatprep.subr.mxu0 0.0
    %579 = vmatpush1.msra.mxu0 0.0
    %580 = vmatprep.subr.mxu0 0.0
    %581 = vmatpush1.msra.mxu0 0.0
    %582 = vmatprep.subr.mxu0 0.0
    %583 = vmatpush1.msra.mxu0 0.0
    %584 = vmatprep.mubr.f32.mxu0 0.0
    %585 = vmatmul.mubr.f32.gmra.mrb[0].mxu0 %v518
    %v586 = vpop.f32.mrb[0].mxu0
    %v587 = vadd.f32 0.0, %v586
    %v588 = vpop.f32.mrb[0].mxu0
    %589 = vdwg.mxu0
    %v590 = vadd.f32 %v134, %v587
    %v591 = vtanh.pop %v590
    %v593 = vsel %vm141, %v591, 0
    %595 = vmatprep.subr.mxu0 0.0
    %596 = vmatpush1.msra.mxu0 %v136
    %597 = vmatprep.subr.mxu0 0.0
    %598 = vmatpush1.msra.mxu0 %v137
    %599 = vmatprep.subr.mxu0 0.0
    %600 = vmatpush1.msra.mxu0 %v138
    %601 = vmatprep.subr.mxu0 0.0
    %602 = vmatpush1.msra.mxu0 %v139
    %603 = vmatprep.subr.mxu0 0.0
    %604 = vmatpush1.msra.mxu0 0.0
    %605 = vmatprep.subr.mxu0 0.0
    %606 = vmatpush1.msra.mxu0 0.0
    %607 = vmatprep.subr.mxu0 0.0
    %608 = vmatpush1.msra.mxu0 0.0
    %609 = vmatprep.subr.mxu0 0.0
    %610 = vmatpush1.msra.mxu0 0.0
    %611 = vmatprep.subr.mxu0 0.0
    %612 = vmatpush1.msra.mxu0 0.0
    %613 = vmatprep.subr.mxu0 0.0
    %614 = vmatpush1.msra.mxu0 0.0
    %615 = vmatprep.subr.mxu0 0.0
    %616 = vmatpush1.msra.mxu0 0.0
    %617 = vmatprep.subr.mxu0 0.0
    %618 = vmatpush1.msra.mxu0 0.0
    %619 = vmatprep.subr.mxu0 0.0
    %620 = vmatpush1.msra.mxu0 0.0
    %621 = vmatprep.subr.mxu0 0.0
    %622 = vmatpush1.msra.mxu0 0.0
    %623 = vmatprep.subr.mxu0 0.0
    %624 = vmatpush1.msra.mxu0 0.0
    %625 = vmatprep.subr.mxu0 0.0
    %626 = vmatpush1.msra.mxu0 0.0
    %627 = vmatprep.subr.mxu0 0.0
    %628 = vmatpush1.msra.mxu0 0.0
    %629 = vmatprep.subr.mxu0 0.0
    %630 = vmatpush1.msra.mxu0 0.0
    %631 = vmatprep.subr.mxu0 0.0
    %632 = vmatpush1.msra.mxu0 0.0
    %633 = vmatprep.subr.mxu0 0.0
    %634 = vmatpush1.msra.mxu0 0.0
    %635 = vmatprep.subr.mxu0 0.0
    %636 = vmatpush1.msra.mxu0 0.0
    %637 = vmatprep.subr.mxu0 0.0
    %638 = vmatpush1.msra.mxu0 0.0
    %639 = vmatprep.subr.mxu0 0.0
    %640 = vmatpush1.msra.mxu0 0.0
    %641 = vmatprep.subr.mxu0 0.0
    %642 = vmatpush1.msra.mxu0 0.0
    %643 = vmatprep.subr.mxu0 0.0
    %644 = vmatpush1.msra.mxu0 0.0
    %645 = vmatprep.subr.mxu0 0.0
    %646 = vmatpush1.msra.mxu0 0.0
    %647 = vmatprep.subr.mxu0 0.0
    %648 = vmatpush1.msra.mxu0 0.0
    %649 = vmatprep.subr.mxu0 0.0
    %650 = vmatpush1.msra.mxu0 0.0
    %651 = vmatprep.subr.mxu0 0.0
    %652 = vmatpush1.msra.mxu0 0.0
    %653 = vmatprep.subr.mxu0 0.0
    %654 = vmatpush1.msra.mxu0 0.0
    %655 = vmatprep.subr.mxu0 0.0
    %656 = vmatpush1.msra.mxu0 0.0
    %657 = vmatprep.subr.mxu0 0.0
    %658 = vmatpush1.msra.mxu0 0.0
    %659 = vmatprep.mubr.f32.mxu0 0.0
    %660 = vmatmul.mubr.f32.gmra.mrb[0].mxu0 %v593
    %v661 = vpop.f32.mrb[0].mxu0
    %v662 = vadd.f32 0.0, %v661
    %v663 = vpop.f32.mrb[0].mxu0
    %664 = vdwg.mxu0
    %v665 = vadd.f32 %v135, %v662
    %v666 = vtanh.pop %v665
    %v667 = vlaneseq
    %v668 = vshrl.u32 %v667, 7
    %v669 = vsub.s32 0, %v668
    %v670 = vrot.slane %v53, %v669
    %v671 = vmul.f32 %v666, %v670
    %v672 = vsel %vm141, %v671, 0.0
    %673 = vadd.xlane.f32.xlu0 %v672
    %v674 = vpop.xlane.xlu0 %673
    %v675 = vlaneseq
    %v676 = vshrl.u32 %v675, 7
    %v677 = vsub.s32 0, %v676
    %v678 = vrot.slane %v54, %v677
    %v679 = vadd.f32 %v674, %v678
    %vm680 = vcmask 7168
    %681 = vst.msk [vmem:[%s3] sm:$0xff] %vm680, %v679
    // Predicated region
    $region26: #{tpu_custom_call.1} parent=1 // pred_check
      _
    $region27: #{tpu_custom_call.1} parent=1 // pred_check_branch
      %683 = sbr.rel (0) target = $region29
    $region28: #{tpu_custom_call.1} parent=1 // pred_region
      _
    $region29: #{tpu_custom_call.1} parent=1 // pred_fallthru
      _
    // Predicated region
    $region30: #{tpu_custom_call.1} parent=1 // pred_check
      _
    $region31: #{tpu_custom_call.1} parent=1 // pred_check_branch
      %685 = sbr.rel (0) target = $region33
    $region32: #{tpu_custom_call.1} parent=1 // pred_region
      _
    $region33: #{tpu_custom_call.1} parent=1 // pred_fallthru
      _
    %686 = vsyncpa [#allocation3], 1
    %687 = vsyncpa [#allocation5], 1

</llo_original>
